<compile_context>
chip_gen: v5e
topology: v5e:2x2
jax: 0.10.0
libtpu: 0.0.40
codegen_flags: <defaults>
</compile_context>

<pallas_src>
import math
import functools

import jax
import jax.numpy as jnp
from jax.experimental import pallas as pl
from jax.experimental.pallas import tpu as pltpu


# ---------------------------------------------------------------------------
# Buffer construction (glue, matches nn.Module.__init__)
# ---------------------------------------------------------------------------
def make_pe_table(d_model, max_len=5000, dtype=jnp.float32):
    """Sinusoidal table, identical math to the PyTorch __init__ (shape [max_len, d_model])."""
    position = jnp.arange(max_len, dtype=jnp.float32)[:, None]            # [max_len, 1]
    div_term = jnp.exp(
        jnp.arange(0, d_model, 2, dtype=jnp.float32) * (-math.log(10000.0) / d_model)
    )
    pe = jnp.zeros((max_len, d_model), dtype=jnp.float32)
    pe = pe.at[:, 0::2].set(jnp.sin(position * div_term))
    pe = pe.at[:, 1::2].set(jnp.cos(position * div_term))
    return pe.astype(dtype)


# ---------------------------------------------------------------------------
# Kernels
# ---------------------------------------------------------------------------
def _pe_add_kernel(x_ref, pe_ref, o_ref, *, batch_group, d_model):
    # x_ref/o_ref: (ts, batch_group*D)   pe_ref: (ts, D)
    # Unrolled per-batch add over static lane slices (no jnp.tile temporary).
    pe = pe_ref[...]
    for b in range(batch_group):
        lo = b * d_model
        hi = lo + d_model
        o_ref[:, lo:hi] = x_ref[:, lo:hi] + pe


def _pe_add_dropout_kernel(seed_ref, x_ref, pe_ref, o_ref, *, batch_group, d_model, rate):
    # Training-mode inverted dropout, computed in the input dtype (widened to f32
    # internally on v5e, which has no bf16 VPU).  Random stream is the TPU hardware
    # PRNG (not bit-identical to torch's RNG).
    # Seed mixes user seed, a per-call salt and both grid indices so every block of
    # every call gets an independent stream.
    pltpu.prng_seed(seed_ref[0], seed_ref[1], pl.program_id(0), pl.program_id(1))
    # Clamp so rate == 0 does not overflow uint32 to "drop everything".
    threshold = jnp.uint32(min(int((1.0 - rate) * 2.0 ** 32), 2 ** 32 - 1))
    scale = jnp.asarray(1.0 / (1.0 - rate), dtype=o_ref.dtype)
    pe = pe_ref[...]
    for b in range(batch_group):
        lo = b * d_model
        hi = lo + d_model
        y = x_ref[:, lo:hi] + pe
        # Sequential draws advance the stateful PRNG -> distinct mask per batch slice.
        bits = pltpu.bitcast(pltpu.prng_random_bits(y.shape), jnp.uint32)
        keep = bits < threshold
        o_ref[:, lo:hi] = jnp.where(keep, y * scale, jnp.zeros_like(y)).astype(o_ref.dtype)


# ---------------------------------------------------------------------------
# Tiling / wrapper
# ---------------------------------------------------------------------------
def _pick_tiles(seq_len, batch, d_model, itemsize, target_block_bytes=4 << 20):
    """Pick (seq_tile, batch_group) so one x block is ~target_block_bytes.

    seq_tile is a multiple of 8 (or the full seq_len).  batch_group defaults to the
    full batch; only when even an 8-row stripe of the full B*D row exceeds the
    target do we chunk the lane axis, and only in multiples of d_model whose lane
    width is a multiple of 128 (valid TPU tile) and divides batch exactly.
    """
    bg = batch
    full_row = batch * d_model * itemsize
    if 8 * full_row > target_block_bytes:
        for cand in range(batch - 1, 0, -1):
            if batch % cand:
                continue
            lanes = cand * d_model
            if lanes % 128:
                continue
            if 8 * lanes * itemsize <= target_block_bytes:
                bg = cand
                break
    row_bytes = bg * d_model * itemsize
    rows = max(1, target_block_bytes // max(1, row_bytes))
    rows = max(8, (rows // 8) * 8)
    rows = min(rows, seq_len)
    return int(rows), int(bg)


def positional_encoding_forward(x, pe, *, dropout_rate=0.1, training=False,
                                seed=0, salt=0, seq_tile=None, batch_group=None,
                                target_block_bytes=4 << 20,
                                donate_x=False, core_parallel=False):
    """x: [S, B, D] -> [S, B, D]   (adds pe[:S] broadcast over batch, then dropout)."""
    S, B, D = x.shape
    if pe.dtype != x.dtype:
        pe = pe.astype(x.dtype)

    # Lane-dense 2-D view (contiguous, no copy).
    x2 = x.reshape(S, B * D)
    itemsize = x.dtype.itemsize

    auto_rows, auto_bg = _pick_tiles(S, B, D, itemsize, target_block_bytes)
    if seq_tile is None:
        seq_tile = auto_rows
    if batch_group is None:
        batch_group = auto_bg
    lanes = batch_group * D

    grid = (pl.cdiv(S, seq_tile), B // batch_group)

    # Block dims are multiples of 8 / 128 or equal to full array dims -> valid tiling.
    x_spec = pl.BlockSpec((seq_tile, lanes), lambda i, j, *_: (i, j))
    pe_spec = pl.BlockSpec((seq_tile, D), lambda i, j, *_: (i, 0))   # windows the table
    out_spec = pl.BlockSpec((seq_tile, lanes), lambda i, j, *_: (i, j))
    out_shape = jax.ShapeDtypeStruct((S, B * D), x.dtype)

    # Explicit VMEM budget: double-buffered x, out and pe blocks + slack, capped
    # comfortably under v7x's 64 MiB physical VMEM (v5e default scoped limit is
    # only 16 MiB, so do not rely on the default once blocks exceed ~2 MiB).
    x_block_bytes = seq_tile * lanes * itemsize
    pe_block_bytes = seq_tile * D * itemsize
    needed = 2 * (2 * x_block_bytes + pe_block_bytes)
    vmem_limit = int(min(max(needed + needed // 4 + (2 << 20), 16 << 20), 48 << 20))

    # TODO(synk): enable core_parallel=True on v7x and verify in the trace that both
    # TensorCores get half of the seq grid; plain "parallel" is near-neutral there.
    seq_sem = pltpu.CORE_PARALLEL if core_parallel else pltpu.PARALLEL
    cparams = pltpu.CompilerParams(
        dimension_semantics=(seq_sem, pltpu.PARALLEL),
        vmem_limit_bytes=vmem_limit,
    )

    # Scheduling hint: one add per element, pure streaming bytes.
    cost = pl.CostEstimate(
        flops=S * B * D,
        transcendentals=0,
        bytes_accessed=2 * S * B * D * itemsize + grid[1] * S * D * itemsize,
    )

    if (not training) or dropout_rate == 0.0:
        # Eval mode: nn.Dropout is identity.
        kern = functools.partial(_pe_add_kernel, batch_group=batch_group, d_model=D)
        y2 = pl.pallas_call(
            kern,
            out_shape=out_shape,
            grid_spec=pltpu.PrefetchScalarGridSpec(
                num_scalar_prefetch=0,
                grid=grid,
                in_specs=[x_spec, pe_spec],
                out_specs=out_spec,
            ),
            compiler_params=cparams,
            cost_estimate=cost,
            input_output_aliases=({0: 0} if donate_x else {}),
        )(x2, pe)
    else:
        seed_arr = jnp.asarray([seed, salt], dtype=jnp.int32)
        kern = functools.partial(_pe_add_dropout_kernel, batch_group=batch_group,
                                 d_model=D, rate=float(dropout_rate))
        y2 = pl.pallas_call(
            kern,
            out_shape=out_shape,
            grid_spec=pltpu.PrefetchScalarGridSpec(
                num_scalar_prefetch=1,
                grid=grid,
                in_specs=[x_spec, pe_spec],
                out_specs=out_spec,
            ),
            compiler_params=cparams,
            cost_estimate=cost,
            input_output_aliases=({1: 0} if donate_x else {}),
        )(seed_arr, x2, pe)

    return y2.reshape(S, B, D)


# ---------------------------------------------------------------------------
# Demo / self-check
# ---------------------------------------------------------------------------
if __name__ == "__main__":
    d_model = 32
    max_len = 64          # small synthetic max_len (module default is 5000)
    seq_len = 8
    batch = 2

    key = jax.random.PRNGKey(0)
    x = jax.random.normal(key, (seq_len, batch, d_model), dtype=jnp.float32)
    pe = make_pe_table(d_model, max_len=max_len)

    # Eval-mode forward (dropout == identity), semantics match module in .eval().
    ref = x + pe[:seq_len][:, None, :]
    out = positional_encoding_forward(x, pe, dropout_rate=0.1, training=False)
    out = jax.block_until_ready(out)

    assert out.shape == (seq_len, batch, d_model)
    assert out.dtype == x.dtype
    assert jnp.allclose(out, ref, atol=1e-6, rtol=1e-6)

    # Training-mode (dropout) path uses the TPU hardware PRNG, which has no CPU
    # lowering -- only exercise it when the backend really is a TPU.
    if jax.default_backend() == "tpu":
        rate = 0.1
        out_train = positional_encoding_forward(x, pe, dropout_rate=rate,
                                                training=True, seed=0, salt=1)
        out_train = jax.block_until_ready(out_train)
        assert out_train.shape == (seq_len, batch, d_model)
        # Kept elements equal (x + pe) / (1 - rate); dropped elements are exactly 0.
        kept = out_train != 0
        scaled_ref = ref / (1.0 - rate)
        assert jnp.allclose(jnp.where(kept, out_train, scaled_ref), scaled_ref,
                            atol=1e-5, rtol=1e-5)

    print("KERNEL_OK")
</pallas_src>

<mosaic_0001>
module attributes {stable_mosaic.version = 11 : i64} {
  func.func @_pe_add_kernel(%arg0: i32, %arg1: i32, %arg2: memref<8x64xf32, #tpu.memory_space<vmem>>, %arg3: memref<8x32xf32, #tpu.memory_space<vmem>>, %arg4: memref<8x64xf32, #tpu.memory_space<vmem>>) attributes {dimension_semantics = [#tpu.dimension_semantics<parallel>, #tpu.dimension_semantics<parallel>], iteration_bounds = array<i64: 1, 1>, scalar_prefetch = 0 : i64, scratch_operands = 0 : i64, tpu.core_type = #tpu.core_type<tc>, window_params = [{transform_indices = @transform_0, window_bounds = array<i64: 8, 64>}, {transform_indices = @transform_1, window_bounds = array<i64: 8, 32>}, {transform_indices = @transform_2, window_bounds = array<i64: 8, 64>}]} {
    %c0 = arith.constant 0 : index
    %c0_0 = arith.constant 0 : index
    %0 = vector.load %arg3[%c0, %c0_0] : memref<8x32xf32, #tpu.memory_space<vmem>>, vector<8x32xf32>
    %c0_1 = arith.constant 0 : index
    %c0_2 = arith.constant 0 : index
    %1 = vector.load %arg2[%c0_1, %c0_2] : memref<8x64xf32, #tpu.memory_space<vmem>>, vector<8x32xf32>
    %2 = arith.addf %1, %0 : vector<8x32xf32>
    %c0_3 = arith.constant 0 : index
    %c0_4 = arith.constant 0 : index
    %3 = vector.load %arg4[%c0_3, %c0_4] : memref<8x64xf32, #tpu.memory_space<vmem>>, vector<8x32xf32>
    tpu.vector_store %arg4[%c0_3, %c0_4], %2 {strides = array<i32>} : memref<8x64xf32, #tpu.memory_space<vmem>>, vector<8x32xf32>,
    %c0_5 = arith.constant 0 : index
    %c32 = arith.constant 32 : index
    %4 = vector.load %arg2[%c0_5, %c32] : memref<8x64xf32, #tpu.memory_space<vmem>>, vector<8x32xf32>
    %5 = arith.addf %4, %0 : vector<8x32xf32>
    %c0_6 = arith.constant 0 : index
    %c32_7 = arith.constant 32 : index
    %6 = vector.load %arg4[%c0_6, %c32_7] : memref<8x64xf32, #tpu.memory_space<vmem>>, vector<8x32xf32>
    tpu.vector_store %arg4[%c0_6, %c32_7], %5 {strides = array<i32>} : memref<8x64xf32, #tpu.memory_space<vmem>>, vector<8x32xf32>,
    return
  }
  func.func @transform_0(%arg0: i32, %arg1: i32) -> (i32, i32) {
    %c0_i32 = arith.constant 0 : i32
    return %arg0, %arg1 : i32, i32
  }
  func.func @transform_1(%arg0: i32, %arg1: i32) -> (i32, i32) {
    %c0_i32 = arith.constant 0 : i32
    %c0_i32_0 = arith.constant 0 : i32
    return %arg0, %c0_i32 : i32, i32
  }
  func.func @transform_2(%arg0: i32, %arg1: i32) -> (i32, i32) {
    %c0_i32 = arith.constant 0 : i32
    return %arg0, %arg1 : i32, i32
  }
}

</mosaic_0001>

<llo_original>
// kernel: tpu_custom_call.1
$region0: #{tpu_custom_call.1}
  #allocation0 [shape = 'u32[]', space=smem, size = 0x4, offset = 0x4, fixed_abs, tag = 'smem constant byte address 0x4 - core index']
  #allocation1 [shape = 'u32[72,128]{1,0:T(1,128)}', space=vmem, size = 0x9000, scoped, tag = 'internal scratch']
  %s0 = inlined_call_operand.vmem [shape: f32[8,64], index: 0, kind: input, shape index: {}]
  %s1 = inlined_call_operand.vmem [shape: f32[64,32], index: 1, kind: input, shape index: {}]
  %s2 = inlined_call_operand.hbm [shape: f32[8,64], index: 2, kind: output, shape index: {}]
  %s3 = sld [smem:[#allocation0]]
  $region18: #{tpu_custom_call.1} parent=0
    _
  %s5 = ssub.s32 1, %s3
  %s6 = scalar_select 0, %s5, %s3
  $region1: #{tpu_custom_call.1} parent=0
    #allocation2 [shape = 'u8[4096]{0}', space=vmem, size = 0x1000, scoped, tag = 'output window, operand 0, single buffered']
    #allocation3 [shape = 's32[1]{0}', space=sflag, size = 0x4, scoped, tag = 'scoped memory for tpu_custom_call.1']
    %7 = vsyncpa [#allocation3], 0
    // Predicated region
    $region2: #{tpu_custom_call.1} parent=1 // pred_check
      _
    $region3: #{tpu_custom_call.1} parent=1 // pred_check_branch
      %9 = sbr.rel (0) target = $region5
    $region4: #{tpu_custom_call.1} parent=1 // pred_region
      _
    $region5: #{tpu_custom_call.1} parent=1 // pred_fallthru
      _
    // Predicated region
    $region6: #{tpu_custom_call.1} parent=1 // pred_check
      _
    $region7: #{tpu_custom_call.1} parent=1 // pred_check_branch
      %11 = sbr.rel (0) target = $region9
    $region8: #{tpu_custom_call.1} parent=1 // pred_region
      _
    $region9: #{tpu_custom_call.1} parent=1 // pred_fallthru
      _
    %v12 = vld [vmem:[%s1] sm:$0xff]
    %v13 = vld [vmem:[%s0] sm:$0xff]
    %v14 = vadd.f32 %v13, %v12
    %vm15 = vcmask 261120
    %16 = vst.msk [vmem:[#allocation2] sm:$0xff] %vm15, %v14
    %v17 = vld [vmem:[%s0] sm:$0xff]
    %19 = vrot.lane.b32.xlu0 %v12, 32
    %v20 = vpop.permute.xlu0 %19
    %v22 = vadd.f32 %v17, %v20
    %vm23 = vcmask 523520
    %24 = vst.msk [vmem:[#allocation2] sm:$0xff] %vm23, %v22
    // Predicated region
    $region10: #{tpu_custom_call.1} parent=1 // pred_check
      _
    $region11: #{tpu_custom_call.1} parent=1 // pred_check_branch
      %26 = sbr.rel (0) target = $region13
    $region12: #{tpu_custom_call.1} parent=1 // pred_region
      %28 = vsyncadd [#allocation3], 0
      %s30 = sshll.u32 [#allocation2], 4
      %s31 = int_to_ptr.vmem [resolvable:$true] %s30
      %s32 = sshll.u32 %s2, 4
      %s33 = int_to_ptr.hbm [resolvable:$true] %s32
      %35 = dma.vmem_to_hbm [thread:$0]  %s31, 128, %s33, [#allocation3]
    $region13: #{tpu_custom_call.1} parent=1 // pred_fallthru
      _
    // Predicated region
    $region14: #{tpu_custom_call.1} parent=1 // pred_check
      _
    $region15: #{tpu_custom_call.1} parent=1 // pred_check_branch
      %37 = sbr.rel (0) target = $region17
    $region16: #{tpu_custom_call.1} parent=1 // pred_region
      %39 = dma.done [#allocation3], 128
    $region17: #{tpu_custom_call.1} parent=1 // pred_fallthru
      _
    %40 = vsyncpa [#allocation3], 1

</llo_original>
